<compile_context>
chip_gen: v5e
topology: v5e:2x2
jax: 0.10.0
libtpu: 0.0.40
codegen_flags: <defaults>
</compile_context>

<pallas_src>
import functools

import jax
import jax.numpy as jnp
from jax.experimental import pallas as pl
from jax.experimental.pallas import tpu as pltpu


def _round_up(n, m):
    return ((n + m - 1) // m) * m


def _actor_kernel(xT_ref, w1T_ref, b1_ref, whT_ref, bh_ref, outT_ref, *, num_actions):
    # Shared trunk (feature-major): h^T = W1^T @ x^T + b1,  LeakyReLU(0.01).
    hT = jnp.dot(w1T_ref[...], xT_ref[...], preferred_element_type=jnp.float32)
    hT = hT + b1_ref[...]                      # [H, 1] broadcast over lanes
    hT = jnp.where(hT >= 0.0, hT, 0.01 * hT)

    # Fused heads: lin^T = Wh^T @ h^T + bh  ->  [2A, tb] (no pad columns/rows).
    linT = jnp.dot(whT_ref[...], hT, preferred_element_type=jnp.float32)
    linT = linT + bh_ref[...]

    # Rows < A: mu = 2*tanh ; rows >= A: sigma = softplus (stable form,
    # 3 transcendentals/element total -- do not add more, v5e EUP is the floor).
    mu = 2.0 * jnp.tanh(linT)
    sig = jnp.maximum(linT, 0.0) + jnp.log1p(jnp.exp(-jnp.abs(linT)))
    row = jax.lax.broadcasted_iota(jnp.int32, linT.shape, 0)
    outT_ref[...] = jnp.where(row < num_actions, mu, sig)


def prepare_actor_params(p):
    """One-time prep: fuse the mu/sigma heads and transpose to feature-major.

    Hoisted out of the per-call path so the fused weights are materialized in
    HBM exactly once (not on every forward call).
    """
    return {
        "w1T": p["w1"].T,                                                   # [H, obs]
        "b1": p["b1"].reshape(-1, 1),                                       # [H, 1]
        "whT": jnp.concatenate([p["w_mu"].T, p["w_sigma"].T], axis=0),      # [2A, H]
        "bh": jnp.concatenate([p["b_mu"], p["b_sigma"]], axis=1).reshape(-1, 1),  # [2A, 1]
    }


def actor_forward(x, kp, *, batch_tile=4096):
    """x: [B, num_observations] float32. kp: output of prepare_actor_params."""
    B, obs = x.shape
    H = kp["w1T"].shape[0]
    two_a = kp["whT"].shape[0]
    A = two_a // 2

    # Batch tile = lane axis of every streamed block -> multiple of 128.
    # Ensure >=2 grid steps whenever B > 128 so both v7x TensorCores get work.
    tb = max(128, min(batch_tile, _round_up(pl.cdiv(B, 2), 128)))
    B_pad = _round_up(B, tb)
    grid = (B_pad // tb,)

    # Layout plumbing: present x feature-major (batch on lanes), pad batch.
    xT = x.T
    if B_pad != B:
        xT = jnp.pad(xT, ((0, 0), (0, B_pad - B)))

    const = lambda shape: pl.BlockSpec(shape, lambda i: (0, 0))

    outT = pl.pallas_call(
        functools.partial(_actor_kernel, num_actions=A),
        out_shape=jax.ShapeDtypeStruct((two_a, B_pad), jnp.float32),
        grid=grid,
        in_specs=[
            pl.BlockSpec((obs, tb), lambda i: (0, i)),   # x^T : streamed per tile
            const((H, obs)),                             # W1^T: VMEM-resident
            const((H, 1)),                               # b1
            const((two_a, H)),                           # fused head weights (un-padded)
            const((two_a, 1)),                           # fused head bias
        ],
        out_specs=pl.BlockSpec((two_a, tb), lambda i: (0, i)),
        compiler_params=pltpu.CompilerParams(
            dimension_semantics=("parallel",),
        ),
    )(xT, kp["w1T"], kp["b1"], kp["whT"], kp["bh"])

    # Tiny [A, B] -> [B, A] views back to the torch convention.
    mu = outT[:A, :B].T
    sigma = outT[A:two_a, :B].T
    return mu, sigma


def init_params(key, num_observations, hidden_size, num_actions):
    """Deterministic synthetic parameters matching the torch module's shapes."""
    ks = jax.random.split(key, 6)
    s1 = 1.0 / jnp.sqrt(num_observations)
    s2 = 1.0 / jnp.sqrt(hidden_size)
    return {
        # stored as [in, out] (transpose of torch's [out, in])
        "w1": jax.random.uniform(ks[0], (num_observations, hidden_size), jnp.float32, -s1, s1),
        "b1": jax.random.uniform(ks[1], (1, hidden_size), jnp.float32, -s1, s1),
        "w_mu": jax.random.uniform(ks[2], (hidden_size, num_actions), jnp.float32, -s2, s2),
        "b_mu": jax.random.uniform(ks[3], (1, num_actions), jnp.float32, -s2, s2),
        "w_sigma": jax.random.uniform(ks[4], (hidden_size, num_actions), jnp.float32, -s2, s2),
        "b_sigma": jax.random.uniform(ks[5], (1, num_actions), jnp.float32, -s2, s2),
    }


def _reference(x, p):
    h = x @ p["w1"] + p["b1"]
    h = jnp.where(h >= 0.0, h, 0.01 * h)
    mu = 2.0 * jnp.tanh(h @ p["w_mu"] + p["b_mu"])
    sigma = jax.nn.softplus(h @ p["w_sigma"] + p["b_sigma"])
    return mu, sigma


if __name__ == "__main__":
    num_observations, hidden_size, num_actions = 16, 32, 8
    batch = 2

    key = jax.random.PRNGKey(0)
    k_x, k_p, k_big, k_huge = jax.random.split(key, 4)
    params = init_params(k_p, num_observations, hidden_size, num_actions)
    kparams = prepare_actor_params(params)   # one-time prep (not in the per-call path)

    # Small batch: single 128-wide tile, padded lanes.
    x = jax.random.normal(k_x, (batch, num_observations), jnp.float32)
    mu, sigma = actor_forward(x, kparams)
    jax.block_until_ready((mu, sigma))
    mu_ref, sigma_ref = _reference(x, params)
    assert mu.shape == (batch, num_actions) and sigma.shape == (batch, num_actions)
    assert jnp.allclose(mu, mu_ref, atol=1e-5)
    assert jnp.allclose(sigma, sigma_ref, atol=1e-5)

    # Medium batch with a small tile: exercises a >1-step pipelined grid + ragged pad.
    x_big = jax.random.normal(k_big, (300, num_observations), jnp.float32)
    mu_b, sigma_b = actor_forward(x_big, kparams, batch_tile=128)
    jax.block_until_ready((mu_b, sigma_b))
    mu_b_ref, sigma_b_ref = _reference(x_big, params)
    assert jnp.allclose(mu_b, mu_b_ref, atol=1e-5)
    assert jnp.allclose(sigma_b, sigma_b_ref, atol=1e-5)

    # Larger batch with the default tile: hits the ">=2 grid steps" (megacore) path.
    x_huge = jax.random.normal(k_huge, (3000, num_observations), jnp.float32)
    mu_h, sigma_h = actor_forward(x_huge, kparams)
    jax.block_until_ready((mu_h, sigma_h))
    mu_h_ref, sigma_h_ref = _reference(x_huge, params)
    assert jnp.allclose(mu_h, mu_h_ref, atol=1e-5)
    assert jnp.allclose(sigma_h, sigma_h_ref, atol=1e-5)

    print("KERNEL_OK")
</pallas_src>

<mosaic_0001>
module attributes {stable_mosaic.version = 11 : i64} {
  func.func @_actor_kernel(%arg0: i32, %arg1: memref<16x128xf32, #tpu.memory_space<vmem>>, %arg2: memref<32x16xf32, #tpu.memory_space<vmem>>, %arg3: memref<32x1xf32, #tpu.memory_space<vmem>>, %arg4: memref<16x32xf32, #tpu.memory_space<vmem>>, %arg5: memref<16x1xf32, #tpu.memory_space<vmem>>, %arg6: memref<16x128xf32, #tpu.memory_space<vmem>>) attributes {dimension_semantics = [#tpu.dimension_semantics<parallel>], iteration_bounds = array<i64: 1>, scalar_prefetch = 0 : i64, scratch_operands = 0 : i64, tpu.core_type = #tpu.core_type<tc>, window_params = [{transform_indices = @transform_0, window_bounds = array<i64: 16, 128>}, {pipeline_mode = #tpu.pipeline_mode<synchronous>, transform_indices = @transform_1, window_bounds = array<i64: 32, 16>}, {pipeline_mode = #tpu.pipeline_mode<synchronous>, transform_indices = @transform_2, window_bounds = array<i64: 32, 1>}, {pipeline_mode = #tpu.pipeline_mode<synchronous>, transform_indices = @transform_3, window_bounds = array<i64: 16, 32>}, {pipeline_mode = #tpu.pipeline_mode<synchronous>, transform_indices = @transform_4, window_bounds = array<i64: 16, 1>}, {transform_indices = @transform_5, window_bounds = array<i64: 16, 128>}]} {
    %c0 = arith.constant 0 : index
    %c0_0 = arith.constant 0 : index
    %0 = vector.load %arg2[%c0, %c0_0] : memref<32x16xf32, #tpu.memory_space<vmem>>, vector<32x16xf32>
    %c0_1 = arith.constant 0 : index
    %c0_2 = arith.constant 0 : index
    %1 = vector.load %arg1[%c0_1, %c0_2] : memref<16x128xf32, #tpu.memory_space<vmem>>, vector<16x128xf32>
    %cst = arith.constant dense<0.000000e+00> : vector<32x128xf32>
    %2 = tpu.matmul %0, %1, %cst {dimension_numbers = #tpu.dot_dimension_numbers<[1], [0], [0], [1], [0, 0, 1, 1], [], []>} : vector<32x16xf32>, vector<16x128xf32>, vector<32x128xf32> -> vector<32x128xf32>
    %c0_3 = arith.constant 0 : index
    %c0_4 = arith.constant 0 : index
    %3 = vector.load %arg3[%c0_3, %c0_4] : memref<32x1xf32, #tpu.memory_space<vmem>>, vector<32x1xf32>
    %4 = vector.broadcast %3 : vector<32x1xf32> to vector<32x128xf32>
    %5 = arith.addf %2, %4 : vector<32x128xf32>
    %cst_5 = arith.constant 0.000000e+00 : f32
    %6 = vector.broadcast %cst_5 : f32 to vector<32x128xf32>
    %7 = arith.cmpf oge, %5, %6 : vector<32x128xf32>
    %cst_6 = arith.constant 0.00999999977 : f32
    %8 = vector.broadcast %cst_6 : f32 to vector<32x128xf32>
    %9 = arith.mulf %8, %5 : vector<32x128xf32>
    %10 = arith.select %7, %5, %9 : vector<32x128xi1>, vector<32x128xf32>
    %c0_7 = arith.constant 0 : index
    %c0_8 = arith.constant 0 : index
    %11 = vector.load %arg4[%c0_7, %c0_8] : memref<16x32xf32, #tpu.memory_space<vmem>>, vector<16x32xf32>
    %cst_9 = arith.constant dense<0.000000e+00> : vector<16x128xf32>
    %12 = tpu.matmul %11, %10, %cst_9 {dimension_numbers = #tpu.dot_dimension_numbers<[1], [0], [0], [1], [0, 0, 1, 1], [], []>} : vector<16x32xf32>, vector<32x128xf32>, vector<16x128xf32> -> vector<16x128xf32>
    %c0_10 = arith.constant 0 : index
    %c0_11 = arith.constant 0 : index
    %13 = vector.load %arg5[%c0_10, %c0_11] : memref<16x1xf32, #tpu.memory_space<vmem>>, vector<16x1xf32>
    %14 = vector.broadcast %13 : vector<16x1xf32> to vector<16x128xf32>
    %15 = arith.addf %12, %14 : vector<16x128xf32>
    %16 = math.tanh %15 : vector<16x128xf32>
    %cst_12 = arith.constant 2.000000e+00 : f32
    %17 = vector.broadcast %cst_12 : f32 to vector<16x128xf32>
    %18 = arith.mulf %17, %16 : vector<16x128xf32>
    %cst_13 = arith.constant 0.000000e+00 : f32
    %19 = vector.broadcast %cst_13 : f32 to vector<16x128xf32>
    %20 = arith.maximumf %15, %19 : vector<16x128xf32>
    %21 = math.absf %15 : vector<16x128xf32>
    %cst_14 = arith.constant 0.000000e+00 : f32
    %22 = vector.broadcast %cst_14 : f32 to vector<16x128xf32>
    %23 = arith.subf %22, %21 : vector<16x128xf32>
    %24 = math.exp %23 : vector<16x128xf32>
    %25 = math.log1p %24 : vector<16x128xf32>
    %26 = arith.addf %20, %25 : vector<16x128xf32>
    %27 = tpu.iota {dimensions = array<i32: 0>} : vector<16x128xi32>
    %c8_i32 = arith.constant 8 : i32
    %28 = vector.broadcast %c8_i32 : i32 to vector<16x128xi32>
    %29 = arith.cmpi slt, %27, %28 : vector<16x128xi32>
    %30 = arith.select %29, %18, %26 : vector<16x128xi1>, vector<16x128xf32>
    %c0_15 = arith.constant 0 : index
    %c0_16 = arith.constant 0 : index
    %31 = vector.load %arg6[%c0_15, %c0_16] : memref<16x128xf32, #tpu.memory_space<vmem>>, vector<16x128xf32>
    tpu.vector_store %arg6[%c0_15, %c0_16], %30 {strides = array<i32>} : memref<16x128xf32, #tpu.memory_space<vmem>>, vector<16x128xf32>,
    return
  }
  func.func @transform_0(%arg0: i32) -> (i32, i32) {
    %c0_i32 = arith.constant 0 : i32
    %c0_i32_0 = arith.constant 0 : i32
    return %c0_i32, %arg0 : i32, i32
  }
  func.func @transform_1(%arg0: i32) -> (i32, i32) {
    %c0_i32 = arith.constant 0 : i32
    %c0_i32_0 = arith.constant 0 : i32
    %c0_i32_1 = arith.constant 0 : i32
    return %c0_i32, %c0_i32_0 : i32, i32
  }
  func.func @transform_2(%arg0: i32) -> (i32, i32) {
    %c0_i32 = arith.constant 0 : i32
    %c0_i32_0 = arith.constant 0 : i32
    %c0_i32_1 = arith.constant 0 : i32
    return %c0_i32, %c0_i32_0 : i32, i32
  }
  func.func @transform_3(%arg0: i32) -> (i32, i32) {
    %c0_i32 = arith.constant 0 : i32
    %c0_i32_0 = arith.constant 0 : i32
    %c0_i32_1 = arith.constant 0 : i32
    return %c0_i32, %c0_i32_0 : i32, i32
  }
  func.func @transform_4(%arg0: i32) -> (i32, i32) {
    %c0_i32 = arith.constant 0 : i32
    %c0_i32_0 = arith.constant 0 : i32
    %c0_i32_1 = arith.constant 0 : i32
    return %c0_i32, %c0_i32_0 : i32, i32
  }
  func.func @transform_5(%arg0: i32) -> (i32, i32) {
    %c0_i32 = arith.constant 0 : i32
    %c0_i32_0 = arith.constant 0 : i32
    return %c0_i32, %arg0 : i32, i32
  }
}

</mosaic_0001>

<llo_original>
// kernel: tpu_custom_call.1
$region0: #{tpu_custom_call.1}
  #allocation0 [shape = 'u32[]', space=smem, size = 0x4, offset = 0x4, fixed_abs, tag = 'smem constant byte address 0x4 - core index']
  #allocation1 [shape = 'u32[72,128]{1,0:T(1,128)}', space=vmem, size = 0x9000, scoped, tag = 'internal scratch']
  %s0 = inlined_call_operand.vmem [shape: f32[16,128], index: 0, kind: input, shape index: {}]
  %s1 = inlined_call_operand.vmem [shape: f32[32,16], index: 1, kind: input, shape index: {}]
  %s2 = inlined_call_operand.vmem [shape: f32[32,1], index: 2, kind: input, shape index: {}]
  %s3 = inlined_call_operand.vmem [shape: f32[16,32], index: 3, kind: input, shape index: {}]
  %s4 = inlined_call_operand.vmem [shape: f32[16,1], index: 4, kind: input, shape index: {}]
  %s5 = inlined_call_operand.hbm [shape: f32[16,128], index: 5, kind: output, shape index: {}]
  %s6 = sld [smem:[#allocation0]]
  $region30: #{tpu_custom_call.1} parent=0
    _
  %s8 = ssub.s32 1, %s6
  %s9 = scalar_select 0, %s8, %s6
  $region1: #{tpu_custom_call.1} parent=0
    #allocation2 [shape = 'u8[8192]{0}', space=vmem, size = 0x2000, scoped, tag = 'output window, operand 0, single buffered']
    #allocation3 [shape = 's32[1]{0}', space=sflag, size = 0x4, scoped, tag = 'scoped memory for tpu_custom_call.1']
    %10 = vsyncpa [#allocation3], 0
    // Predicated region
    $region2: #{tpu_custom_call.1} parent=1 // pred_check
      _
    $region3: #{tpu_custom_call.1} parent=1 // pred_check_branch
      %12 = sbr.rel (0) target = $region5
    $region4: #{tpu_custom_call.1} parent=1 // pred_region
      _
    $region5: #{tpu_custom_call.1} parent=1 // pred_fallthru
      _
    // Predicated region
    $region6: #{tpu_custom_call.1} parent=1 // pred_check
      _
    $region7: #{tpu_custom_call.1} parent=1 // pred_check_branch
      %14 = sbr.rel (0) target = $region9
    $region8: #{tpu_custom_call.1} parent=1 // pred_region
      _
    $region9: #{tpu_custom_call.1} parent=1 // pred_fallthru
      _
    // Predicated region
    $region10: #{tpu_custom_call.1} parent=1 // pred_check
      _
    $region11: #{tpu_custom_call.1} parent=1 // pred_check_branch
      %16 = sbr.rel (0) target = $region13
    $region12: #{tpu_custom_call.1} parent=1 // pred_region
      _
    $region13: #{tpu_custom_call.1} parent=1 // pred_fallthru
      _
    // Predicated region
    $region14: #{tpu_custom_call.1} parent=1 // pred_check
      _
    $region15: #{tpu_custom_call.1} parent=1 // pred_check_branch
      %18 = sbr.rel (0) target = $region17
    $region16: #{tpu_custom_call.1} parent=1 // pred_region
      _
    $region17: #{tpu_custom_call.1} parent=1 // pred_fallthru
      _
    // Predicated region
    $region18: #{tpu_custom_call.1} parent=1 // pred_check
      _
    $region19: #{tpu_custom_call.1} parent=1 // pred_check_branch
      %20 = sbr.rel (0) target = $region21
    $region20: #{tpu_custom_call.1} parent=1 // pred_region
      _
    $region21: #{tpu_custom_call.1} parent=1 // pred_fallthru
      _
    %v21 = vld [vmem:[%s1] sm:$0xff]
    %v22 = vld [vmem:[%s1 + $0x8] sm:$0xff]
    %v23 = vld [vmem:[%s1 + $0x10] sm:$0xff]
    %v24 = vld [vmem:[%s1 + $0x18] sm:$0xff]
    %v25 = vld [vmem:[%s0] sm:$0xff]
    %v26 = vld [vmem:[%s0 + $0x8] sm:$0xff]
    %v27 = vld [vmem:[%s2] sm:$0xff]
    %v28 = vld [vmem:[%s2 + $0x8] sm:$0xff]
    %v29 = vld [vmem:[%s2 + $0x10] sm:$0xff]
    %v30 = vld [vmem:[%s2 + $0x18] sm:$0xff]
    %32 = vset.pattern.permute.xlu0 0
    %33 = vperm.xlu0 %32, %v27
    %v34 = vpop.permute.xlu0 %33
    %37 = vset.pattern.permute.xlu0 0
    %38 = vperm.xlu0 %37, %v28
    %v39 = vpop.permute.xlu0 %38
    %42 = vset.pattern.permute.xlu0 0
    %43 = vperm.xlu0 %42, %v29
    %v44 = vpop.permute.xlu0 %43
    %47 = vset.pattern.permute.xlu0 0
    %48 = vperm.xlu0 %47, %v30
    %v49 = vpop.permute.xlu0 %48
    %vm51 = vcmask 130048
    %v53 = vsel %vm51, %v21, 0
    %v56 = vsel %vm51, %v22, 0
    %v59 = vsel %vm51, %v23, 0
    %v62 = vsel %vm51, %v24, 0
    %64 = vmatpush.msra.mxu0 0.0
    %65 = vmatpush.msra.mxu0 0.0
    %66 = vmatpush.msra.mxu0 0.0
    %67 = vmatpush.msra.mxu0 0.0
    %68 = vmatpush.msra.mxu0 0.0
    %69 = vmatpush.msra.mxu0 0.0
    %70 = vmatpush.msra.mxu0 0.0
    %71 = vmatpush.msra.mxu0 0.0
    %72 = vmatpush.msra.mxu0 0.0
    %73 = vmatpush.msra.mxu0 0.0
    %74 = vmatpush.msra.mxu0 0.0
    %75 = vmatpush.msra.mxu0 0.0
    %76 = vmatpush.msra.mxu0 0.0
    %77 = vmatpush.msra.mxu0 0.0
    %78 = vmatpush.msra.mxu0 %v26
    %79 = vmatpush.msra.mxu0 %v25
    %80 = vmatmul.f32.gmra.mxu0 %v53
    %v81 = vpop.f32.mrf.mxu0
    %v82 = vadd.f32 %v34, %v81
    %83 = vmatmul.f32.gmra.mxu0 %v56
    %v84 = vpop.f32.mrf.mxu0
    %v85 = vadd.f32 %v39, %v84
    %86 = vmatmul.f32.gmra.mxu0 %v59
    %v87 = vpop.f32.mrf.mxu0
    %v88 = vadd.f32 %v44, %v87
    %89 = vmatmul.f32.gmra.mxu0 %v62
    %v90 = vpop.f32.mrf.mxu0
    %v91 = vadd.f32 %v49, %v90
    %92 = vdwg.mxu0
    %vm93 = vcmp.ge.f32.partialorder %v82, 0.0
    %vm94 = vcmp.ge.f32.partialorder %v85, 0.0
    %vm95 = vcmp.ge.f32.partialorder %v88, 0.0
    %vm96 = vcmp.ge.f32.partialorder %v91, 0.0
    %v97 = vmul.f32 %v82, 0.01
    %v98 = vmul.f32 %v85, 0.01
    %v99 = vmul.f32 %v88, 0.01
    %v100 = vmul.f32 %v91, 0.01
    %v101 = vsel %vm93, %v82, %v97
    %v102 = vsel %vm94, %v85, %v98
    %v103 = vsel %vm95, %v88, %v99
    %v104 = vsel %vm96, %v91, %v100
    %v105 = vld [vmem:[%s3] sm:$0xff]
    %v106 = vld [vmem:[%s3 + $0x8] sm:$0xff]
    %v107 = vld [vmem:[%s4] sm:$0xff]
    %v108 = vld [vmem:[%s4 + $0x8] sm:$0xff]
    %110 = vset.pattern.permute.xlu0 0
    %111 = vperm.xlu0 %110, %v107
    %v112 = vpop.permute.xlu0 %111
    %115 = vset.pattern.permute.xlu0 0
    %116 = vperm.xlu0 %115, %v108
    %v117 = vpop.permute.xlu0 %116
    %vm119 = vcmask 261120
    %v121 = vsel %vm119, %v105, 0
    %v124 = vsel %vm119, %v106, 0
    %126 = vmatpush.msra.mxu0 0.0
    %127 = vmatpush.msra.mxu0 0.0
    %128 = vmatpush.msra.mxu0 0.0
    %129 = vmatpush.msra.mxu0 0.0
    %130 = vmatpush.msra.mxu0 0.0
    %131 = vmatpush.msra.mxu0 0.0
    %132 = vmatpush.msra.mxu0 0.0
    %133 = vmatpush.msra.mxu0 0.0
    %134 = vmatpush.msra.mxu0 0.0
    %135 = vmatpush.msra.mxu0 0.0
    %136 = vmatpush.msra.mxu0 0.0
    %137 = vmatpush.msra.mxu0 0.0
    %138 = vmatpush.msra.mxu0 %v104
    %139 = vmatpush.msra.mxu0 %v103
    %140 = vmatpush.msra.mxu0 %v102
    %141 = vmatpush.msra.mxu0 %v101
    %142 = vmatmul.f32.gmra.mxu0 %v121
    %v143 = vpop.f32.mrf.mxu0
    %v144 = vadd.f32 %v112, %v143
    %145 = vmatmul.f32.gmra.mxu0 %v124
    %v146 = vpop.f32.mrf.mxu0
    %v147 = vadd.f32 %v117, %v146
    %148 = vdwg.mxu0
    %v149 = vtanh.pop %v144
    %v150 = vtanh.pop %v147
    %v151 = vmul.f32 %v149, 2.0
    %v152 = vmul.f32 %v150, 2.0
    %v153 = vmax.f32 %v144, 0.0
    %v154 = vmax.f32 %v147, 0.0
    %v155 = vand.u32 2147483647, %v144
    %v156 = vand.u32 2147483647, %v147
    %v157 = vsub.f32 0.0, %v155
    %v158 = vsub.f32 0.0, %v156
    %v159 = vmul.f32 %v157, 1.442695
    %v160 = vpow.pop %v159
    %v161 = vmul.f32 %v158, 1.442695
    %v162 = vpow.pop %v161
    %v163 = vadd.f32 %v160, 1.0
    %v164 = vlog2.pop %v163
    %v165 = vmul.f32 %v164, 0.6931472
    %v166 = vmul.f32 -0.5, %v160
    %v167 = vadd.f32 %v166, 1.0
    %v168 = vmul.f32 %v167, %v160
    %v169 = vand.u32 2147483647, %v160
    %vm170 = vcmp.lt.f32.partialorder %v169, 0.0004427343
    %v171 = vsel %vm170, %v168, %v165
    %v172 = vadd.f32 %v162, 1.0
    %v173 = vlog2.pop %v172
    %v174 = vmul.f32 %v173, 0.6931472
    %v175 = vmul.f32 -0.5, %v162
    %v176 = vadd.f32 %v175, 1.0
    %v177 = vmul.f32 %v176, %v162
    %v178 = vand.u32 2147483647, %v162
    %vm179 = vcmp.lt.f32.partialorder %v178, 0.0004427343
    %v180 = vsel %vm179, %v177, %v174
    %v181 = vadd.f32 %v153, %v171
    %v182 = vadd.f32 %v154, %v180
    %v183 = vlaneseq
    %v184 = vshrl.u32 %v183, 7
    %v185 = vadd.s32 %v184, 8
    %vm186 = vcmp.lt.s32.totalorder %v184, 8
    %vm187 = vcmp.lt.s32.totalorder %v185, 8
    %v188 = vsel %vm186, %v151, %v181
    %v189 = vsel %vm187, %v152, %v182
    %190 = vst [vmem:[#allocation2] sm:$0xff] %v188
    %191 = vst [vmem:[#allocation2 + $0x8] sm:$0xff] %v189
    // Predicated region
    $region22: #{tpu_custom_call.1} parent=1 // pred_check
      _
    $region23: #{tpu_custom_call.1} parent=1 // pred_check_branch
      %193 = sbr.rel (0) target = $region25
    $region24: #{tpu_custom_call.1} parent=1 // pred_region
      %195 = vsyncadd [#allocation3], 0
      %s196 = sshll.u32 [#allocation2], 4
      %s197 = int_to_ptr.vmem [resolvable:$true] %s196
      %s198 = sshll.u32 %s5, 4
      %s199 = int_to_ptr.hbm [resolvable:$true] %s198
      %204 = dma.vmem_to_hbm [thread:$0]  %s197, 256, %s199, [#allocation3], 128, 128, 8
    $region25: #{tpu_custom_call.1} parent=1 // pred_fallthru
      _
    // Predicated region
    $region26: #{tpu_custom_call.1} parent=1 // pred_check
      _
    $region27: #{tpu_custom_call.1} parent=1 // pred_check_branch
      %206 = sbr.rel (0) target = $region29
    $region28: #{tpu_custom_call.1} parent=1 // pred_region
      %208 = dma.done [#allocation3], 256
    $region29: #{tpu_custom_call.1} parent=1 // pred_fallthru
      _
    %209 = vsyncpa [#allocation3], 1

</llo_original>
